<compile_context>
chip_gen: v7x
topology: tpu7x:2x2x1
jax: 0.10.0
libtpu: 0.0.40
codegen_flags: <defaults>
</compile_context>

<pallas_src>
import functools

import jax
import jax.numpy as jnp
from jax.experimental import pallas as pl
from jax.experimental.pallas import tpu as pltpu


def _mlp_kernel(x_ref, wgu_ref, wd_ref, o_ref, acc_ref):
    """One (seq_tile i, intermediate_tile j) grid step of the SwiGLU MLP."""
    j = pl.program_id(1)

    @pl.when(j == 0)
    def _():
        acc_ref[...] = jnp.zeros_like(acc_ref)

    x = x_ref[...]
    # gate / up projections: operands stay in the input dtype (bf16 -> full MXU rate),
    # accumulate in f32.
    gate = jnp.dot(x, wgu_ref[0], preferred_element_type=jnp.float32)   # [ts, ti] f32
    up = jnp.dot(x, wgu_ref[1], preferred_element_type=jnp.float32)     # [ts, ti] f32
    # SiLU ("silu"/"swish" act_fn of the Mllama text config), computed in place,
    # then cast immediately so only one f32 [ts, ti] temporary stays live.
    gate = gate * jax.nn.sigmoid(gate)
    h = (gate * up).astype(wd_ref.dtype)
    acc_ref[...] += jnp.dot(h, wd_ref[...], preferred_element_type=jnp.float32)

    @pl.when(j == pl.num_programs(1) - 1)
    def _():
        o_ref[...] = acc_ref[...].astype(o_ref.dtype)


def _vmem_capacity_bytes():
    try:
        info = pltpu.get_tpu_info()
        return int(getattr(info, "vmem_capacity_bytes", 64 * 1024 * 1024))
    except Exception:
        return 64 * 1024 * 1024  # conservative: v7x per-TensorCore VMEM


def _vmem_need_bytes(ts, ti, H, itemsize):
    x_b = 2 * ts * H * itemsize            # x tile, double-buffered
    w_b = 2 * 3 * H * ti * itemsize        # gate+up (2) + down (1) tiles, double-buffered
    o_b = 2 * ts * H * itemsize            # output tile, double-buffered
    a_b = ts * H * 4                       # resident f32 accumulator
    return x_b + w_b + o_b + a_b


def _pick_tiles(S, H, I, itemsize, ts, ti, vmem_budget):
    """Largest ts first (amortizes weight re-streaming), then largest MXU-aligned ti
    that fits the VMEM budget. Falls back to full-extent blocks for tiny shapes."""
    ts_opts = [1024, 512, 256, 128, 64, 32, 16, 8]
    ti_opts = [2048, 1024, 512, 256, 128]

    ts_c = [ts] if ts is not None else ([c for c in ts_opts if S % c == 0] or [S])
    ti_c = [ti] if ti is not None else ([c for c in ti_opts if I % c == 0] or [I])

    if ts is None:
        # Prefer >= 2 sequence tiles so the 'parallel' axis can feed both v7x TensorCores.
        multi = [c for c in ts_c if S // c >= 2]
        single = [c for c in ts_c if S // c < 2]
        ts_c = multi + single

    for ts_ in ts_c:
        for ti_ in ti_c:
            if _vmem_need_bytes(ts_, ti_, H, itemsize) <= vmem_budget:
                return ts_, ti_
    return ts_c[-1], ti_c[-1]


@functools.partial(jax.jit, static_argnames=("ts", "ti"))
def mllama_text_mlp(x, w_gate_up, w_down, *, ts=None, ti=None):
    """x: [S, H]; w_gate_up: [2, H, I]; w_down: [I, H] -> [S, H]."""
    S, H = x.shape
    two, H2, I = w_gate_up.shape
    assert two == 2 and H2 == H
    assert w_down.shape == (I, H)

    itemsize = jnp.dtype(x.dtype).itemsize
    vmem_cap = _vmem_capacity_bytes()
    vmem_budget = int(vmem_cap * 0.6)  # headroom for compiler scratch / semaphores

    ts, ti = _pick_tiles(S, H, I, itemsize, ts, ti, vmem_budget)

    assert S % ts == 0 and I % ti == 0, (S, ts, I, ti)
    if ts != S:
        assert ts % 8 == 0, "seq tile must be sublane-aligned (multiple of 8)"
    if ti != I:
        assert ti % 128 == 0, "intermediate tile must be lane-aligned (multiple of 128)"

    need = _vmem_need_bytes(ts, ti, H, itemsize)
    vmem_limit = min(int(vmem_cap * 0.9), max(int(need * 1.5), 16 * 1024 * 1024))

    grid = (S // ts, I // ti)
    return pl.pallas_call(
        _mlp_kernel,
        out_shape=jax.ShapeDtypeStruct((S, H), x.dtype),
        grid_spec=pltpu.PrefetchScalarGridSpec(
            num_scalar_prefetch=0,
            grid=grid,
            in_specs=[
                pl.BlockSpec((ts, H), lambda i, j: (i, 0)),        # x tile (constant in j)
                pl.BlockSpec((2, H, ti), lambda i, j: (0, 0, j)),  # fused gate+up weights
                pl.BlockSpec((ti, H), lambda i, j: (j, 0)),        # down weight tile
            ],
            out_specs=pl.BlockSpec((ts, H), lambda i, j: (i, 0)),
            scratch_shapes=[pltpu.VMEM((ts, H), jnp.float32)],
        ),
        compiler_params=pltpu.CompilerParams(
            dimension_semantics=("parallel", "arbitrary"),
            vmem_limit_bytes=vmem_limit,
        ),
    )(x, w_gate_up, w_down)


def _reference(x, w_gate_up, w_down):
    # Mirrors the PyTorch forward: fused gate_up proj, view(..., 2, I), silu(g) * u, down proj.
    xf = x.astype(jnp.float32)
    g = xf @ w_gate_up[0].astype(jnp.float32)
    u = xf @ w_gate_up[1].astype(jnp.float32)
    return (jax.nn.silu(g) * u) @ w_down.astype(jnp.float32)


if __name__ == "__main__":
    key = jax.random.PRNGKey(0)
    k1, k2, k3, k4, k5, k6 = jax.random.split(key, 6)

    # --- Check 1: tiny f32 shapes (full-extent blocks, grid = (1, 1)) -------------------
    S, H, I = 8, 32, 64
    x = jax.random.normal(k1, (S, H), dtype=jnp.float32)
    w_gu = jax.random.normal(k2, (2, H, I), dtype=jnp.float32) * 0.05
    w_d = jax.random.normal(k3, (I, H), dtype=jnp.float32) * 0.05

    out = jax.block_until_ready(mllama_text_mlp(x, w_gu, w_d))
    ref = _reference(x, w_gu, w_d)
    assert out.shape == (S, H) and out.dtype == x.dtype
    assert jnp.allclose(out, ref, atol=1e-5, rtol=1e-5)

    # --- Check 2: bf16 operands with a real multi-tile grid (2 x 2) ---------------------
    S, H, I = 256, 256, 512
    xb = jax.random.normal(k4, (S, H), dtype=jnp.float32).astype(jnp.bfloat16)
    w_gub = (jax.random.normal(k5, (2, H, I), dtype=jnp.float32) * 0.05).astype(jnp.bfloat16)
    w_db = (jax.random.normal(k6, (I, H), dtype=jnp.float32) * 0.05).astype(jnp.bfloat16)

    outb = jax.block_until_ready(mllama_text_mlp(xb, w_gub, w_db, ts=128, ti=256))
    refb = _reference(xb, w_gub, w_db)
    assert outb.shape == (S, H) and outb.dtype == jnp.bfloat16
    max_err = jnp.max(jnp.abs(outb.astype(jnp.float32) - refb))
    assert max_err < 5e-2, max_err

    print("KERNEL_OK")
</pallas_src>

<mosaic_0001>
module attributes {stable_mosaic.version = 11 : i64} {
  func.func @_mlp_kernel(%arg0: i32, %arg1: i32, %arg2: memref<8x32xf32, #tpu.memory_space<vmem>>, %arg3: memref<2x32x64xf32, #tpu.memory_space<vmem>>, %arg4: memref<64x32xf32, #tpu.memory_space<vmem>>, %arg5: memref<8x32xf32, #tpu.memory_space<vmem>>, %arg6: memref<8x32xf32, #tpu.memory_space<vmem>>) attributes {dimension_semantics = [#tpu.dimension_semantics<parallel>, #tpu.dimension_semantics<arbitrary>], iteration_bounds = array<i64: 1, 1>, scalar_prefetch = 0 : i64, scratch_operands = 1 : i64, tpu.core_type = #tpu.core_type<tc>, window_params = [{transform_indices = @transform_0, window_bounds = array<i64: 8, 32>}, {transform_indices = @transform_1, window_bounds = array<i64: 2, 32, 64>}, {transform_indices = @transform_2, window_bounds = array<i64: 64, 32>}, {transform_indices = @transform_3, window_bounds = array<i64: 8, 32>}]} {
    %c0_i32 = arith.constant 0 : i32
    %0 = arith.cmpi eq, %arg1, %c0_i32 : i32
    %1 = arith.extui %0 : i1 to i32
    %c0_i32_0 = arith.constant 0 : i32
    %2 = arith.cmpi ne, %1, %c0_i32_0 : i32
    scf.if %2 {
      %cst_18 = arith.constant 0.000000e+00 : f32
      %25 = vector.broadcast %cst_18 : f32 to vector<8x32xf32>
      %c0_19 = arith.constant 0 : index
      %c0_20 = arith.constant 0 : index
      %26 = vector.load %arg6[%c0_19, %c0_20] : memref<8x32xf32, #tpu.memory_space<vmem>>, vector<8x32xf32>
      tpu.vector_store %arg6[%c0_19, %c0_20], %25 {strides = array<i32>} : memref<8x32xf32, #tpu.memory_space<vmem>>, vector<8x32xf32>,
    } else {
    }
    %c0 = arith.constant 0 : index
    %c0_1 = arith.constant 0 : index
    %3 = vector.load %arg2[%c0, %c0_1] : memref<8x32xf32, #tpu.memory_space<vmem>>, vector<8x32xf32>
    %c0_2 = arith.constant 0 : index
    %c0_3 = arith.constant 0 : index
    %c0_4 = arith.constant 0 : index
    %4 = vector.load %arg3[%c0_2, %c0_3, %c0_4] : memref<2x32x64xf32, #tpu.memory_space<vmem>>, vector<1x32x64xf32>
    %5 = vector.shape_cast %4 : vector<1x32x64xf32> to vector<32x64xf32>
    %cst = arith.constant dense<0.000000e+00> : vector<8x64xf32>
    %6 = tpu.matmul %3, %5, %cst {dimension_numbers = #tpu.dot_dimension_numbers<[1], [0], [0], [1], [0, 0, 1, 1], [], []>} : vector<8x32xf32>, vector<32x64xf32>, vector<8x64xf32> -> vector<8x64xf32>
    %c1 = arith.constant 1 : index
    %c0_5 = arith.constant 0 : index
    %c0_6 = arith.constant 0 : index
    %7 = vector.load %arg3[%c1, %c0_5, %c0_6] : memref<2x32x64xf32, #tpu.memory_space<vmem>>, vector<1x32x64xf32>
    %8 = vector.shape_cast %7 : vector<1x32x64xf32> to vector<32x64xf32>
    %cst_7 = arith.constant dense<0.000000e+00> : vector<8x64xf32>
    %9 = tpu.matmul %3, %8, %cst_7 {dimension_numbers = #tpu.dot_dimension_numbers<[1], [0], [0], [1], [0, 0, 1, 1], [], []>} : vector<8x32xf32>, vector<32x64xf32>, vector<8x64xf32> -> vector<8x64xf32>
    %10 = arith.negf %6 : vector<8x64xf32>
    %11 = math.exp %10 : vector<8x64xf32>
    %cst_8 = arith.constant 1.000000e+00 : f32
    %12 = vector.broadcast %cst_8 : f32 to vector<8x64xf32>
    %13 = arith.addf %12, %11 : vector<8x64xf32>
    %14 = arith.divf %12, %13 : vector<8x64xf32>
    %15 = arith.mulf %6, %14 : vector<8x64xf32>
    %16 = arith.mulf %15, %9 : vector<8x64xf32>
    %c0_9 = arith.constant 0 : index
    %c0_10 = arith.constant 0 : index
    %17 = vector.load %arg6[%c0_9, %c0_10] : memref<8x32xf32, #tpu.memory_space<vmem>>, vector<8x32xf32>
    %c0_11 = arith.constant 0 : index
    %c0_12 = arith.constant 0 : index
    %18 = vector.load %arg4[%c0_11, %c0_12] : memref<64x32xf32, #tpu.memory_space<vmem>>, vector<64x32xf32>
    %cst_13 = arith.constant dense<0.000000e+00> : vector<8x32xf32>
    %19 = tpu.matmul %16, %18, %cst_13 {dimension_numbers = #tpu.dot_dimension_numbers<[1], [0], [0], [1], [0, 0, 1, 1], [], []>} : vector<8x64xf32>, vector<64x32xf32>, vector<8x32xf32> -> vector<8x32xf32>
    %20 = arith.addf %17, %19 : vector<8x32xf32>
    %c0_14 = arith.constant 0 : index
    %c0_15 = arith.constant 0 : index
    %21 = vector.load %arg6[%c0_14, %c0_15] : memref<8x32xf32, #tpu.memory_space<vmem>>, vector<8x32xf32>
    tpu.vector_store %arg6[%c0_14, %c0_15], %20 {strides = array<i32>} : memref<8x32xf32, #tpu.memory_space<vmem>>, vector<8x32xf32>,
    %c0_i32_16 = arith.constant 0 : i32
    %22 = arith.cmpi eq, %arg1, %c0_i32_16 : i32
    %23 = arith.extui %22 : i1 to i32
    %c0_i32_17 = arith.constant 0 : i32
    %24 = arith.cmpi ne, %23, %c0_i32_17 : i32
    scf.if %24 {
      %c0_18 = arith.constant 0 : index
      %c0_19 = arith.constant 0 : index
      %25 = vector.load %arg6[%c0_18, %c0_19] : memref<8x32xf32, #tpu.memory_space<vmem>>, vector<8x32xf32>
      %c0_20 = arith.constant 0 : index
      %c0_21 = arith.constant 0 : index
      %26 = vector.load %arg5[%c0_20, %c0_21] : memref<8x32xf32, #tpu.memory_space<vmem>>, vector<8x32xf32>
      tpu.vector_store %arg5[%c0_20, %c0_21], %25 {strides = array<i32>} : memref<8x32xf32, #tpu.memory_space<vmem>>, vector<8x32xf32>,
    } else {
    }
    return
  }
  func.func @transform_0(%arg0: i32, %arg1: i32) -> (i32, i32) {
    %c0_i32 = arith.constant 0 : i32
    %c0_i32_0 = arith.constant 0 : i32
    return %arg0, %c0_i32 : i32, i32
  }
  func.func @transform_1(%arg0: i32, %arg1: i32) -> (i32, i32, i32) {
    %c0_i32 = arith.constant 0 : i32
    %c0_i32_0 = arith.constant 0 : i32
    %c0_i32_1 = arith.constant 0 : i32
    return %c0_i32, %c0_i32_0, %arg1 : i32, i32, i32
  }
  func.func @transform_2(%arg0: i32, %arg1: i32) -> (i32, i32) {
    %c0_i32 = arith.constant 0 : i32
    %c0_i32_0 = arith.constant 0 : i32
    return %arg1, %c0_i32 : i32, i32
  }
  func.func @transform_3(%arg0: i32, %arg1: i32) -> (i32, i32) {
    %c0_i32 = arith.constant 0 : i32
    %c0_i32_0 = arith.constant 0 : i32
    return %arg0, %c0_i32 : i32, i32
  }
}

</mosaic_0001>

<llo_original>
// kernel: mllama_text_mlp.1
$region0: #{mllama_text_mlp.1}
  #allocation0 [shape = 'u32[]', space=smem, size = 0x4, offset = 0x4, fixed_abs, tag = 'smem constant byte address 0x4 - core index']
  #allocation1 [shape = 'u32[144,128]{1,0:T(1,128)}', space=vmem, size = 0x12000, scoped, tag = 'internal scratch']
  #allocation2 [shape = 'f32[8,32]{1,0:T(8,128)}', space=vmem, size = 0x1000, scoped, tag = 'scratch operand']
  %s0 = inlined_call_operand.vmem [shape: f32[8,32], index: 0, kind: input, shape index: {}]
  %s1 = inlined_call_operand.vmem [shape: f32[2,32,64], index: 1, kind: input, shape index: {}]
  %s2 = inlined_call_operand.vmem [shape: f32[64,32], index: 2, kind: input, shape index: {}]
  %s3 = inlined_call_operand.hbm [shape: f32[8,32], index: 3, kind: output, shape index: {}]
  %s4 = sld [smem:[#allocation0]]
  $region30: #{mllama_text_mlp.1} parent=0
    _
  %s6 = ssub.s32 1, %s4
  %s7 = scalar_select 0, %s6, %s4
  $region1: #{mllama_text_mlp.1} parent=0
    #allocation3 [shape = 'u8[4096]{0}', space=vmem, size = 0x1000, scoped, tag = 'output window, operand 0, single buffered']
    #allocation4 [shape = 's32[1]{0}', space=sflag, size = 0x4, scoped, tag = 'scoped memory for mllama_text_mlp.1']
    %8 = vsyncpa [#allocation4], 0
    // Predicated region
    $region2: #{mllama_text_mlp.1} parent=1 // pred_check
      _
    $region3: #{mllama_text_mlp.1} parent=1 // pred_check_branch
      %10 = sbr.rel (0) target = $region5
    $region4: #{mllama_text_mlp.1} parent=1 // pred_region
      _
    $region5: #{mllama_text_mlp.1} parent=1 // pred_fallthru
      _
    // Predicated region
    $region6: #{mllama_text_mlp.1} parent=1 // pred_check
      _
    $region7: #{mllama_text_mlp.1} parent=1 // pred_check_branch
      %12 = sbr.rel (0) target = $region9
    $region8: #{mllama_text_mlp.1} parent=1 // pred_region
      _
    $region9: #{mllama_text_mlp.1} parent=1 // pred_fallthru
      _
    // Predicated region
    $region10: #{mllama_text_mlp.1} parent=1 // pred_check
      _
    $region11: #{mllama_text_mlp.1} parent=1 // pred_check_branch
      %14 = sbr.rel (0) target = $region13
    $region12: #{mllama_text_mlp.1} parent=1 // pred_region
      _
    $region13: #{mllama_text_mlp.1} parent=1 // pred_fallthru
      _
    %p15 = scmp.eq.s32.totalorder 0, 0
    // Predicated region
    $region14: #{mllama_text_mlp.1} parent=1 // pred_check
      %p16 = pneg %p15
    $region15: #{mllama_text_mlp.1} parent=1 // pred_check_branch
      %18 = sbr.rel (%p16) target = $region17
    $region16: #{mllama_text_mlp.1} parent=1 // pred_region
      %vm19 = vcmask 261120
      %20 = vst.msk [vmem:[#allocation2] sm:$0xff] %vm19, 0.0
    $region17: #{mllama_text_mlp.1} parent=1 // pred_fallthru
      _
    %v21 = vld [vmem:[%s0] sm:$0xff]
    %v22 = vld [vmem:[%s1] sm:$0xff]
    %v23 = vld [vmem:[%s1 + $0x8] sm:$0xff]
    %v24 = vld [vmem:[%s1 + $0x10] sm:$0xff]
    %v25 = vld [vmem:[%s1 + $0x18] sm:$0xff]
    %vm26 = vcmask 261120
    %v28 = vsel %vm26, %v21, 0
    %30 = vmatprep.subr.mxu0 0.0
    %31 = vmatpush1.msra.mxu0 %v22
    %32 = vmatprep.subr.mxu0 0.0
    %33 = vmatpush1.msra.mxu0 %v23
    %34 = vmatprep.subr.mxu0 0.0
    %35 = vmatpush1.msra.mxu0 %v24
    %36 = vmatprep.subr.mxu0 0.0
    %37 = vmatpush1.msra.mxu0 %v25
    %38 = vmatprep.subr.mxu0 0.0
    %39 = vmatpush1.msra.mxu0 0.0
    %40 = vmatprep.subr.mxu0 0.0
    %41 = vmatpush1.msra.mxu0 0.0
    %42 = vmatprep.subr.mxu0 0.0
    %43 = vmatpush1.msra.mxu0 0.0
    %44 = vmatprep.subr.mxu0 0.0
    %45 = vmatpush1.msra.mxu0 0.0
    %46 = vmatprep.subr.mxu0 0.0
    %47 = vmatpush1.msra.mxu0 0.0
    %48 = vmatprep.subr.mxu0 0.0
    %49 = vmatpush1.msra.mxu0 0.0
    %50 = vmatprep.subr.mxu0 0.0
    %51 = vmatpush1.msra.mxu0 0.0
    %52 = vmatprep.subr.mxu0 0.0
    %53 = vmatpush1.msra.mxu0 0.0
    %54 = vmatprep.subr.mxu0 0.0
    %55 = vmatpush1.msra.mxu0 0.0
    %56 = vmatprep.subr.mxu0 0.0
    %57 = vmatpush1.msra.mxu0 0.0
    %58 = vmatprep.subr.mxu0 0.0
    %59 = vmatpush1.msra.mxu0 0.0
    %60 = vmatprep.subr.mxu0 0.0
    %61 = vmatpush1.msra.mxu0 0.0
    %62 = vmatprep.subr.mxu0 0.0
    %63 = vmatpush1.msra.mxu0 0.0
    %64 = vmatprep.subr.mxu0 0.0
    %65 = vmatpush1.msra.mxu0 0.0
    %66 = vmatprep.subr.mxu0 0.0
    %67 = vmatpush1.msra.mxu0 0.0
    %68 = vmatprep.subr.mxu0 0.0
    %69 = vmatpush1.msra.mxu0 0.0
    %70 = vmatprep.subr.mxu0 0.0
    %71 = vmatpush1.msra.mxu0 0.0
    %72 = vmatprep.subr.mxu0 0.0
    %73 = vmatpush1.msra.mxu0 0.0
    %74 = vmatprep.subr.mxu0 0.0
    %75 = vmatpush1.msra.mxu0 0.0
    %76 = vmatprep.subr.mxu0 0.0
    %77 = vmatpush1.msra.mxu0 0.0
    %78 = vmatprep.subr.mxu0 0.0
    %79 = vmatpush1.msra.mxu0 0.0
    %80 = vmatprep.subr.mxu0 0.0
    %81 = vmatpush1.msra.mxu0 0.0
    %82 = vmatprep.subr.mxu0 0.0
    %83 = vmatpush1.msra.mxu0 0.0
    %84 = vmatprep.subr.mxu0 0.0
    %85 = vmatpush1.msra.mxu0 0.0
    %86 = vmatprep.subr.mxu0 0.0
    %87 = vmatpush1.msra.mxu0 0.0
    %88 = vmatprep.subr.mxu0 0.0
    %89 = vmatpush1.msra.mxu0 0.0
    %90 = vmatprep.subr.mxu0 0.0
    %91 = vmatpush1.msra.mxu0 0.0
    %92 = vmatprep.subr.mxu0 0.0
    %93 = vmatpush1.msra.mxu0 0.0
    %94 = vmatprep.mubr.f32.mxu0 0.0
    %95 = vmatmul.mubr.f32.gmra.mrb[0].mxu0 %v28
    %v96 = vpop.f32.mrb[0].mxu0
    %v97 = vadd.f32 0.0, %v96
    %v98 = vpop.f32.mrb[0].mxu0
    %99 = vdwg.mxu0
    %s100 = scalar_lea.vmem %s1, 32
    %v101 = vld [vmem:[%s100] sm:$0xff]
    %v102 = vld [vmem:[%s100 + $0x8] sm:$0xff]
    %v103 = vld [vmem:[%s100 + $0x10] sm:$0xff]
    %v104 = vld [vmem:[%s100 + $0x18] sm:$0xff]
    %105 = vmatprep.subr.mxu0 0.0
    %106 = vmatpush1.msra.mxu0 %v101
    %107 = vmatprep.subr.mxu0 0.0
    %108 = vmatpush1.msra.mxu0 %v102
    %109 = vmatprep.subr.mxu0 0.0
    %110 = vmatpush1.msra.mxu0 %v103
    %111 = vmatprep.subr.mxu0 0.0
    %112 = vmatpush1.msra.mxu0 %v104
    %113 = vmatprep.subr.mxu0 0.0
    %114 = vmatpush1.msra.mxu0 0.0
    %115 = vmatprep.subr.mxu0 0.0
    %116 = vmatpush1.msra.mxu0 0.0
    %117 = vmatprep.subr.mxu0 0.0
    %118 = vmatpush1.msra.mxu0 0.0
    %119 = vmatprep.subr.mxu0 0.0
    %120 = vmatpush1.msra.mxu0 0.0
    %121 = vmatprep.subr.mxu0 0.0
    %122 = vmatpush1.msra.mxu0 0.0
    %123 = vmatprep.subr.mxu0 0.0
    %124 = vmatpush1.msra.mxu0 0.0
    %125 = vmatprep.subr.mxu0 0.0
    %126 = vmatpush1.msra.mxu0 0.0
    %127 = vmatprep.subr.mxu0 0.0
    %128 = vmatpush1.msra.mxu0 0.0
    %129 = vmatprep.subr.mxu0 0.0
    %130 = vmatpush1.msra.mxu0 0.0
    %131 = vmatprep.subr.mxu0 0.0
    %132 = vmatpush1.msra.mxu0 0.0
    %133 = vmatprep.subr.mxu0 0.0
    %134 = vmatpush1.msra.mxu0 0.0
    %135 = vmatprep.subr.mxu0 0.0
    %136 = vmatpush1.msra.mxu0 0.0
    %137 = vmatprep.subr.mxu0 0.0
    %138 = vmatpush1.msra.mxu0 0.0
    %139 = vmatprep.subr.mxu0 0.0
    %140 = vmatpush1.msra.mxu0 0.0
    %141 = vmatprep.subr.mxu0 0.0
    %142 = vmatpush1.msra.mxu0 0.0
    %143 = vmatprep.subr.mxu0 0.0
    %144 = vmatpush1.msra.mxu0 0.0
    %145 = vmatprep.subr.mxu0 0.0
    %146 = vmatpush1.msra.mxu0 0.0
    %147 = vmatprep.subr.mxu0 0.0
    %148 = vmatpush1.msra.mxu0 0.0
    %149 = vmatprep.subr.mxu0 0.0
    %150 = vmatpush1.msra.mxu0 0.0
    %151 = vmatprep.subr.mxu0 0.0
    %152 = vmatpush1.msra.mxu0 0.0
    %153 = vmatprep.subr.mxu0 0.0
    %154 = vmatpush1.msra.mxu0 0.0
    %155 = vmatprep.subr.mxu0 0.0
    %156 = vmatpush1.msra.mxu0 0.0
    %157 = vmatprep.subr.mxu0 0.0
    %158 = vmatpush1.msra.mxu0 0.0
    %159 = vmatprep.subr.mxu0 0.0
    %160 = vmatpush1.msra.mxu0 0.0
    %161 = vmatprep.subr.mxu0 0.0
    %162 = vmatpush1.msra.mxu0 0.0
    %163 = vmatprep.subr.mxu0 0.0
    %164 = vmatpush1.msra.mxu0 0.0
    %165 = vmatprep.subr.mxu0 0.0
    %166 = vmatpush1.msra.mxu0 0.0
    %167 = vmatprep.subr.mxu0 0.0
    %168 = vmatpush1.msra.mxu0 0.0
    %169 = vmatprep.mubr.f32.mxu0 0.0
    %170 = vmatmul.mubr.f32.gmra.mrb[0].mxu0 %v28
    %v171 = vpop.f32.mrb[0].mxu0
    %v172 = vadd.f32 0.0, %v171
    %v173 = vpop.f32.mrb[0].mxu0
    %174 = vdwg.mxu0
    %v175 = vxor.u32 %v97, 2147483648
    %v176 = vmul.f32 %v175, 1.442695
    %v177 = vpow.pop %v176
    %v178 = vadd.f32 %v177, 1.0
    %v179 = vrcp.pop %v178
    %v180 = vmul.f32 1.0, %v179
    %v181 = vmul.f32 %v97, %v180
    %v182 = vmul.f32 %v181, %v172
    %v183 = vld [vmem:[#allocation2] sm:$0xff]
    %v184 = vld [vmem:[%s2] sm:$0xff]
    %v185 = vld [vmem:[%s2 + $0x8] sm:$0xff]
    %v186 = vld [vmem:[%s2 + $0x10] sm:$0xff]
    %v187 = vld [vmem:[%s2 + $0x18] sm:$0xff]
    %v188 = vld [vmem:[%s2 + $0x20] sm:$0xff]
    %v189 = vld [vmem:[%s2 + $0x28] sm:$0xff]
    %v190 = vld [vmem:[%s2 + $0x30] sm:$0xff]
    %v191 = vld [vmem:[%s2 + $0x38] sm:$0xff]
    %vm192 = vcmask 523264
    %v194 = vsel %vm192, %v182, 0
    %196 = vmatprep.subr.mxu0 0.0
    %197 = vmatpush1.msra.mxu0 %v184
    %198 = vmatprep.subr.mxu0 0.0
    %199 = vmatpush1.msra.mxu0 %v185
    %200 = vmatprep.subr.mxu0 0.0
    %201 = vmatpush1.msra.mxu0 %v186
    %202 = vmatprep.subr.mxu0 0.0
    %203 = vmatpush1.msra.mxu0 %v187
    %204 = vmatprep.subr.mxu0 0.0
    %205 = vmatpush1.msra.mxu0 %v188
    %206 = vmatprep.subr.mxu0 0.0
    %207 = vmatpush1.msra.mxu0 %v189
    %208 = vmatprep.subr.mxu0 0.0
    %209 = vmatpush1.msra.mxu0 %v190
    %210 = vmatprep.subr.mxu0 0.0
    %211 = vmatpush1.msra.mxu0 %v191
    %212 = vmatprep.subr.mxu0 0.0
    %213 = vmatpush1.msra.mxu0 0.0
    %214 = vmatprep.subr.mxu0 0.0
    %215 = vmatpush1.msra.mxu0 0.0
    %216 = vmatprep.subr.mxu0 0.0
    %217 = vmatpush1.msra.mxu0 0.0
    %218 = vmatprep.subr.mxu0 0.0
    %219 = vmatpush1.msra.mxu0 0.0
    %220 = vmatprep.subr.mxu0 0.0
    %221 = vmatpush1.msra.mxu0 0.0
    %222 = vmatprep.subr.mxu0 0.0
    %223 = vmatpush1.msra.mxu0 0.0
    %224 = vmatprep.subr.mxu0 0.0
    %225 = vmatpush1.msra.mxu0 0.0
    %226 = vmatprep.subr.mxu0 0.0
    %227 = vmatpush1.msra.mxu0 0.0
    %228 = vmatprep.subr.mxu0 0.0
    %229 = vmatpush1.msra.mxu0 0.0
    %230 = vmatprep.subr.mxu0 0.0
    %231 = vmatpush1.msra.mxu0 0.0
    %232 = vmatprep.subr.mxu0 0.0
    %233 = vmatpush1.msra.mxu0 0.0
    %234 = vmatprep.subr.mxu0 0.0
    %235 = vmatpush1.msra.mxu0 0.0
    %236 = vmatprep.subr.mxu0 0.0
    %237 = vmatpush1.msra.mxu0 0.0
    %238 = vmatprep.subr.mxu0 0.0
    %239 = vmatpush1.msra.mxu0 0.0
    %240 = vmatprep.subr.mxu0 0.0
    %241 = vmatpush1.msra.mxu0 0.0
    %242 = vmatprep.subr.mxu0 0.0
    %243 = vmatpush1.msra.mxu0 0.0
    %244 = vmatprep.subr.mxu0 0.0
    %245 = vmatpush1.msra.mxu0 0.0
    %246 = vmatprep.subr.mxu0 0.0
    %247 = vmatpush1.msra.mxu0 0.0
    %248 = vmatprep.subr.mxu0 0.0
    %249 = vmatpush1.msra.mxu0 0.0
    %250 = vmatprep.subr.mxu0 0.0
    %251 = vmatpush1.msra.mxu0 0.0
    %252 = vmatprep.subr.mxu0 0.0
    %253 = vmatpush1.msra.mxu0 0.0
    %254 = vmatprep.subr.mxu0 0.0
    %255 = vmatpush1.msra.mxu0 0.0
    %256 = vmatprep.subr.mxu0 0.0
    %257 = vmatpush1.msra.mxu0 0.0
    %258 = vmatprep.subr.mxu0 0.0
    %259 = vmatpush1.msra.mxu0 0.0
    %260 = vmatprep.mubr.f32.mxu0 0.0
    %261 = vmatmul.mubr.f32.gmra.mrb[0].mxu0 %v194
    %v262 = vpop.f32.mrb[0].mxu0
    %v263 = vadd.f32 0.0, %v262
    %v264 = vpop.f32.mrb[0].mxu0
    %265 = vdwg.mxu0
    %v266 = vadd.f32 %v183, %v263
    %267 = vst.msk [vmem:[#allocation2] sm:$0xff] %vm26, %v266
    // Predicated region
    $region18: #{mllama_text_mlp.1} parent=1 // pred_check
      %p268 = pneg %p15
    $region19: #{mllama_text_mlp.1} parent=1 // pred_check_branch
      %270 = sbr.rel (%p268) target = $region21
    $region20: #{mllama_text_mlp.1} parent=1 // pred_region
      %v271 = vld [vmem:[#allocation2] sm:$0xff]
      %272 = vst.msk [vmem:[#allocation3] sm:$0xff] %vm26, %v271
    $region21: #{mllama_text_mlp.1} parent=1 // pred_fallthru
      _
    // Predicated region
    $region22: #{mllama_text_mlp.1} parent=1 // pred_check
      _
    $region23: #{mllama_text_mlp.1} parent=1 // pred_check_branch
      %274 = sbr.rel (0) target = $region25
    $region24: #{mllama_text_mlp.1} parent=1 // pred_region
      %s276 = ssub.s32 128, 128
      %277 = vsyncadd [#allocation4], %s276
      %s279 = sshll.u32 [#allocation3], 4
      %s280 = int_to_ptr.vmem [resolvable:$true] %s279
      %282 = dma.vmem_to_hbm [thread:$0]  %s280, 128, %s3, [#allocation4]
    $region25: #{mllama_text_mlp.1} parent=1 // pred_fallthru
      _
    // Predicated region
    $region26: #{mllama_text_mlp.1} parent=1 // pred_check
      _
    $region27: #{mllama_text_mlp.1} parent=1 // pred_check_branch
      %284 = sbr.rel (0) target = $region29
    $region28: #{mllama_text_mlp.1} parent=1 // pred_region
      %285 = dma.done [#allocation4], 128
    $region29: #{mllama_text_mlp.1} parent=1 // pred_fallthru
      _
    %286 = vsyncpa [#allocation4], 1

</llo_original>
